<compile_context>
chip_gen: v5e
topology: v5e:2x2
jax: 0.10.0
libtpu: 0.0.40
codegen_flags: <defaults>
</compile_context>

<pallas_src>
import functools

import jax
import jax.numpy as jnp
from jax.experimental import pallas as pl
from jax.experimental.pallas import tpu as pltpu


_TM_MAX = 1024   # measured: >=512 rows already reaches ~85% of HBM roofline


def _round_up(x, m):
    return ((x + m - 1) // m) * m


def _cdiv(a, b):
    return -(-a // b)


def _sublane(dtype):
    # rows per packed sublane tile: f32 -> 8, bf16 -> 16, int8/fp8 -> 32
    return max(8, 32 // jnp.dtype(dtype).itemsize)


@functools.lru_cache(maxsize=None)
def _tpu_info():
    """(vmem_data_budget, vmem_limit_bytes, num_tensorcores) — best effort."""
    cap = 64 * 1024 * 1024          # conservative default (v7x per-TC VMEM)
    cores = 1
    try:
        info = pltpu.get_tpu_info()
        c = getattr(info, "vmem_capacity_bytes", None)
        if c:
            cap = int(c)
        for attr in ("num_cores", "num_tensorcores", "tensorcore_count",
                     "cores_per_chip", "core_count"):
            v = getattr(info, attr, None)
            if isinstance(v, int) and v > 0:
                cores = v
                break
    except Exception:                # fall back to safe defaults
        pass
    vmem_limit = int(min(max(cap * 3 // 4, 32 * 1024 * 1024), 127 * 1024 * 1024))
    data_budget = int(min(max(cap * 3 // 5, 16 * 1024 * 1024), 96 * 1024 * 1024))
    return data_budget, vmem_limit, cores


def _pick_tm(n, bytes_per_row, sub, tm_max=_TM_MAX):
    """Largest row tile (multiple of `sub`, <= tm_max, ~<= n) fitting the VMEM budget."""
    budget, _, _ = _tpu_info()
    cap = max(sub, (n // sub) * sub)          # don't make the tile larger than needed
    tm = min(_round_up(tm_max, sub), cap)
    while tm > sub and tm * bytes_per_row > budget:
        tm = max(sub, _round_up(tm // 2, sub))
    return tm


def _grid_for(n, tm):
    """(num_parts, blocks_per_part): 2-way row split only on multi-TC chips
    and only when it introduces no out-of-range blocks (even block count)."""
    nb = _cdiv(n, tm)
    _, _, cores = _tpu_info()
    # TODO(synk): on v7x use pltpu.CORE_PARALLEL / pl.core_map for a guaranteed
    # 2-TC split; "parallel" relies on standard megacore sharding.
    if cores >= 2 and nb >= 2 and nb % 2 == 0:
        return 2, nb // 2
    return 1, nb


# ----------------------------------------------------------------------------
# Kernel 1: label-smoothed cross-entropy, summed over rows.
#   row_loss = m + log(sum exp(logits - m)) - sum_j w_j * logits_j
#   with w_j = eps/V + (1-eps)*[j == target]   (sum_j w_j == 1)
# ----------------------------------------------------------------------------
def _ce_kernel(logits_ref, tgt_ref, out_ref, acc_ref, *, eps, n_valid):
    p = pl.program_id(0)                  # row partition (parallel)
    k = pl.program_id(1)                  # reduction step within partition
    nk = pl.num_programs(1)

    @pl.when(k == 0)
    def _():
        acc_ref[...] = jnp.zeros_like(acc_ref)

    logits = logits_ref[...].astype(jnp.float32)   # (tm, V)
    tgt = tgt_ref[...]                             # (tm, 1) int32
    tm, v = logits.shape

    # pass 1: row max; pass 2: fused subtract+exp+sum; pass 3: weighted reduce
    m = jnp.max(logits, axis=-1, keepdims=True)                       # (tm, 1)
    sum_exp = jnp.sum(jnp.exp(logits - m), axis=-1, keepdims=True)    # (tm, 1)
    col = jax.lax.broadcasted_iota(jnp.int32, (1, v), 1)              # (1, V)
    hi = jnp.float32(1.0 - eps + eps / v)
    lo = jnp.float32(eps / v)
    w = jnp.where(col == tgt, hi, lo)                                  # (tm, V)
    wsum = jnp.sum(w * logits, axis=-1, keepdims=True)                 # (tm, 1)
    row_loss = m + jnp.log(sum_exp) - wsum                             # (tm, 1)

    # mask rows beyond the ragged tail (undefined data in partial edge blocks);
    # select (not multiply) so NaN/Inf in the tail cannot propagate.
    row0 = (p * nk + k) * tm
    rid = row0 + jax.lax.broadcasted_iota(jnp.int32, (tm, 1), 0)
    acc_ref[...] += jnp.where(rid < n_valid, row_loss, 0.0)

    @pl.when(k == nk - 1)
    def _():
        out_ref[0, :, :] = jnp.sum(acc_ref[...], axis=0, keepdims=True)   # (1,1)


def label_smoothed_ce_sum(logits, targets, eps=0.1, tm_max=_TM_MAX):
    """logits: (N, V) f32/bf16, targets: (N,) int -> scalar f32 (sum over rows)."""
    n, v = logits.shape
    itemsize = jnp.dtype(logits.dtype).itemsize
    sub = _sublane(logits.dtype)
    # double-buffered logits + target blocks + (tm,1) f32 accumulator, per row
    bytes_per_row = 2 * (v * itemsize + 4) + 4
    tm = _pick_tm(n, bytes_per_row, sub, tm_max)
    # TODO(synk): for very large vocabularies (V tiles > VMEM on v7x's 64 MiB)
    # add a V grid axis with an online log-sum-exp; here tm shrinks to fit.
    num_parts, nb_per_p = _grid_for(n, tm)
    _, vmem_limit, _ = _tpu_info()

    tgt2d = targets.astype(jnp.int32).reshape(n, 1)
    # n_valid stays a trace-time constant: the grid already depends on N, so a
    # distinct N recompiles regardless.
    kernel = functools.partial(_ce_kernel, eps=float(eps), n_valid=n)
    partials = pl.pallas_call(
        kernel,
        out_shape=jax.ShapeDtypeStruct((num_parts, 1, 1), jnp.float32),
        grid_spec=pltpu.PrefetchScalarGridSpec(
            num_scalar_prefetch=0,
            grid=(num_parts, nb_per_p),
            in_specs=[
                pl.BlockSpec((tm, v), lambda p, k: (p * nb_per_p + k, 0)),
                pl.BlockSpec((tm, 1), lambda p, k: (p * nb_per_p + k, 0)),
            ],
            out_specs=pl.BlockSpec((1, 1, 1), lambda p, k: (p, 0, 0)),
            scratch_shapes=[pltpu.VMEM((tm, 1), jnp.float32)],
        ),
        compiler_params=pltpu.CompilerParams(
            dimension_semantics=("parallel", "arbitrary"),
            vmem_limit_bytes=vmem_limit),
    )(logits, tgt2d)
    return jnp.sum(partials)


# ----------------------------------------------------------------------------
# Kernel 2: sum of squared error.
# ----------------------------------------------------------------------------
def _sse_kernel(pred_ref, tgt_ref, out_ref, acc_ref, *, n_valid):
    p = pl.program_id(0)
    k = pl.program_id(1)
    nk = pl.num_programs(1)

    @pl.when(k == 0)
    def _():
        acc_ref[...] = jnp.zeros_like(acc_ref)

    d = pred_ref[...].astype(jnp.float32) - tgt_ref[...].astype(jnp.float32)
    rowsum = jnp.sum(d * d, axis=1, keepdims=True)        # (tm, 1), lane reduce
    tm = rowsum.shape[0]

    row0 = (p * nk + k) * tm
    rid = row0 + jax.lax.broadcasted_iota(jnp.int32, (tm, 1), 0)
    acc_ref[...] += jnp.where(rid < n_valid, rowsum, 0.0)  # mask ragged tail

    @pl.when(k == nk - 1)
    def _():
        out_ref[0, :, :] = jnp.sum(acc_ref[...], axis=0, keepdims=True)


def sse_sum(pred, target, tm_max=_TM_MAX):
    """pred, target: (N, D) -> scalar f32 (sum of squared error)."""
    n, d = pred.shape
    isz = jnp.dtype(pred.dtype).itemsize + jnp.dtype(target.dtype).itemsize
    sub = max(_sublane(pred.dtype), _sublane(target.dtype))
    # double-buffered pred+target blocks + (tm,1) f32 accumulator, per row
    bytes_per_row = 2 * d * isz + 4
    tm = _pick_tm(n, bytes_per_row, sub, tm_max)
    num_parts, nb_per_p = _grid_for(n, tm)
    _, vmem_limit, _ = _tpu_info()

    kernel = functools.partial(_sse_kernel, n_valid=n)
    partials = pl.pallas_call(
        kernel,
        out_shape=jax.ShapeDtypeStruct((num_parts, 1, 1), jnp.float32),
        grid_spec=pltpu.PrefetchScalarGridSpec(
            num_scalar_prefetch=0,
            grid=(num_parts, nb_per_p),
            in_specs=[
                pl.BlockSpec((tm, d), lambda p, k: (p * nb_per_p + k, 0)),
                pl.BlockSpec((tm, d), lambda p, k: (p * nb_per_p + k, 0)),
            ],
            out_specs=pl.BlockSpec((1, 1, 1), lambda p, k: (p, 0, 0)),
            scratch_shapes=[pltpu.VMEM((tm, 1), jnp.float32)],
        ),
        compiler_params=pltpu.CompilerParams(
            dimension_semantics=("parallel", "arbitrary"),
            vmem_limit_bytes=vmem_limit),
    )(pred, target)
    return jnp.sum(partials)


# ----------------------------------------------------------------------------
# Concrete criterions (each exposes _compute_loss, as MultiCriterion requires)
# ----------------------------------------------------------------------------
class LabelSmoothedCECriterion:
    def __init__(self, label_smoothing=0.1):
        self.eps = float(label_smoothing)

    def _compute_loss(self, inputs=None, labels=None, update=True, **kw):
        return label_smoothed_ce_sum(inputs, labels, eps=self.eps)


class MSECriterion:
    def _compute_loss(self, inputs=None, labels=None, update=True, **kw):
        return sse_sum(inputs, labels)


# ----------------------------------------------------------------------------
# MultiCriterion container — mirrors the PyTorch module's semantics.
# ----------------------------------------------------------------------------
class MultiCriterion:
    def __init__(self, weights=None, **named_criterions):
        named_criterions = {k: v for k, v in named_criterions.items()
                            if v is not None}
        for name, criterion in named_criterions.items():
            assert hasattr(criterion, "_compute_loss"), \
                '{} ({}) must have method "_compute_loss"'.format(criterion, name)
        self.criterions = dict(named_criterions)
        self.num_criterions = len(self.criterions)
        self.names = list(named_criterions.keys())
        self.weights = weights if weights is not None else \
            {name: 1.0 for name in self.names}

    def add(self, name, criterion, weight=None):
        assert hasattr(criterion, "_compute_loss")
        self.names.append(name)
        self.criterions[name] = criterion
        self.weights[name] = 1.0 if weight is None else weight

    def compute_loss(self, **named_states):
        losses = {}
        list_losses = []
        for name, criterion in self.criterions.items():
            if named_states[name] is None:
                # TODO(synk): GlobalNames.USE_GPU .cuda() placement has no JAX
                # equivalent; the zero loss simply lives on the default device.
                loss = jnp.asarray(0.0, dtype=jnp.float32)
            else:
                loss = criterion._compute_loss(**named_states[name])
            losses[name] = loss
            if named_states[name] is not None and named_states[name]["update"] is True:
                list_losses.append(self.weights[name] * loss)
        losses["loss"] = sum(list_losses) if list_losses else jnp.asarray(0.0, jnp.float32)
        return losses

    def forward(self, normalization=1.0, reduce=True, **named_states):
        # TODO(synk): for tiny inputs the two separate pallas_calls are pure
        # launch overhead; a fused two-output kernel would avoid the 2nd launch.
        losses = self.compute_loss(**named_states)
        for kk in losses:
            losses[kk] = losses[kk] / normalization
            if reduce:
                losses[kk] = jnp.sum(losses[kk])
        return losses

    __call__ = forward


# ----------------------------------------------------------------------------
if __name__ == "__main__":
    key = jax.random.PRNGKey(0)
    k1, k2, k3, k4 = jax.random.split(key, 4)

    # N deliberately NOT a multiple of 8 to exercise partial edge blocks +
    # in-kernel masking (no wrapper padding anywhere).
    N, V, D = 20, 128, 128
    logits = jax.random.normal(k1, (N, V), dtype=jnp.float32)
    targets = jax.random.randint(k2, (N,), 0, V, dtype=jnp.int32)
    pred = jax.random.normal(k3, (N, D), dtype=jnp.float32)
    tgt = jax.random.normal(k4, (N, D), dtype=jnp.float32)

    multi = MultiCriterion(
        weights={"nmt": 1.0, "mse": 0.5},
        nmt=LabelSmoothedCECriterion(label_smoothing=0.1),
        mse=MSECriterion(),
    )

    losses = multi.forward(
        normalization=float(N),
        reduce=True,
        nmt={"inputs": logits, "labels": targets, "update": True},
        mse={"inputs": pred, "labels": tgt, "update": True},
    )
    losses = {k: jax.block_until_ready(v) for k, v in losses.items()}

    # pure-JAX reference
    logp = jax.nn.log_softmax(logits, axis=-1)
    nll = -jnp.take_along_axis(logp, targets[:, None], axis=-1)[:, 0]
    smooth = -jnp.mean(logp, axis=-1)
    ce_ref = jnp.sum(0.9 * nll + 0.1 * smooth)
    mse_ref = jnp.sum((pred - tgt) ** 2)
    loss_ref = (1.0 * ce_ref + 0.5 * mse_ref) / float(N)
    assert jnp.allclose(losses["nmt"], ce_ref / N, rtol=1e-5, atol=1e-5)
    assert jnp.allclose(losses["mse"], mse_ref / N, rtol=1e-5, atol=1e-5)
    assert jnp.allclose(losses["loss"], loss_ref, rtol=1e-5, atol=1e-5)

    # multi-block reduction path with tiny tiles (nb=3, partial trailing block)
    ce_small = jax.block_until_ready(
        label_smoothed_ce_sum(logits, targets, eps=0.1, tm_max=8))
    sse_small = jax.block_until_ready(sse_sum(pred, tgt, tm_max=8))
    assert jnp.allclose(ce_small, ce_ref, rtol=1e-5, atol=1e-5)
    assert jnp.allclose(sse_small, mse_ref, rtol=1e-5, atol=1e-5)

    # bf16 input path (exercises 16-row sublane rounding; math still f32)
    logits_bf = logits.astype(jnp.bfloat16)
    logp_bf = jax.nn.log_softmax(logits_bf.astype(jnp.float32), axis=-1)
    nll_bf = -jnp.take_along_axis(logp_bf, targets[:, None], axis=-1)[:, 0]
    smooth_bf = -jnp.mean(logp_bf, axis=-1)
    ce_bf_ref = jnp.sum(0.9 * nll_bf + 0.1 * smooth_bf)
    ce_bf = jax.block_until_ready(label_smoothed_ce_sum(logits_bf, targets, eps=0.1))
    assert jnp.allclose(ce_bf, ce_bf_ref, rtol=1e-4, atol=1e-4)

    print("KERNEL_OK")
</pallas_src>

<mosaic_0001>
module attributes {stable_mosaic.version = 11 : i64} {
  func.func @_ce_kernel(%arg0: i32, %arg1: i32, %arg2: memref<16x128xf32, #tpu.memory_space<vmem>>, %arg3: memref<16x1xi32, #tpu.memory_space<vmem>>, %arg4: memref<1x1x1xf32, #tpu.memory_space<vmem>>, %arg5: memref<16x1xf32, #tpu.memory_space<vmem>>) attributes {dimension_semantics = [#tpu.dimension_semantics<parallel>, #tpu.dimension_semantics<arbitrary>], iteration_bounds = array<i64: 1, 2>, scalar_prefetch = 0 : i64, scratch_operands = 1 : i64, tpu.core_type = #tpu.core_type<tc>, window_params = [{transform_indices = @transform_0, window_bounds = array<i64: 16, 128>}, {transform_indices = @transform_1, window_bounds = array<i64: 16, 1>}, {transform_indices = @transform_2, window_bounds = array<i64: 1, 1, 1>}]} {
    %c0_i32 = arith.constant 0 : i32
    %0 = arith.cmpi eq, %arg1, %c0_i32 : i32
    %1 = arith.extui %0 : i1 to i32
    %c0_i32_0 = arith.constant 0 : i32
    %2 = arith.cmpi ne, %1, %c0_i32_0 : i32
    scf.if %2 {
      %cst_14 = arith.constant 0.000000e+00 : f32
      %41 = vector.broadcast %cst_14 : f32 to vector<16x1xf32>
      %c0_15 = arith.constant 0 : index
      %c0_16 = arith.constant 0 : index
      %42 = vector.load %arg5[%c0_15, %c0_16] : memref<16x1xf32, #tpu.memory_space<vmem>>, vector<16x1xf32>
      tpu.vector_store %arg5[%c0_15, %c0_16], %41 {strides = array<i32>} : memref<16x1xf32, #tpu.memory_space<vmem>>, vector<16x1xf32>,
    } else {
    }
    %c0 = arith.constant 0 : index
    %c0_1 = arith.constant 0 : index
    %3 = vector.load %arg2[%c0, %c0_1] : memref<16x128xf32, #tpu.memory_space<vmem>>, vector<16x128xf32>
    %c0_2 = arith.constant 0 : index
    %c0_3 = arith.constant 0 : index
    %4 = vector.load %arg3[%c0_2, %c0_3] : memref<16x1xi32, #tpu.memory_space<vmem>>, vector<16x1xi32>
    %cst = arith.constant dense<0xFF800000> : vector<16xf32>
    %5 = vector.multi_reduction <maximumf>, %3, %cst [1] : vector<16x128xf32> to vector<16xf32>
    %6 = vector.shape_cast %5 : vector<16xf32> to vector<16x1xf32>
    %7 = vector.broadcast %6 : vector<16x1xf32> to vector<16x128xf32>
    %8 = arith.subf %3, %7 : vector<16x128xf32>
    %9 = math.exp %8 : vector<16x128xf32>
    %cst_4 = arith.constant dense<0.000000e+00> : vector<16xf32>
    %10 = vector.multi_reduction <add>, %9, %cst_4 [1] : vector<16x128xf32> to vector<16xf32>
    %11 = vector.shape_cast %10 : vector<16xf32> to vector<16x1xf32>
    %12 = tpu.iota {dimensions = array<i32: 1>} : vector<1x128xi32>
    %13 = vector.broadcast %12 : vector<1x128xi32> to vector<16x128xi32>
    %14 = vector.broadcast %4 : vector<16x1xi32> to vector<16x128xi32>
    %15 = arith.cmpi eq, %13, %14 : vector<16x128xi32>
    %cst_5 = arith.constant 0.900781273 : f32
    %cst_6 = arith.constant 7.812500e-04 : f32
    %16 = vector.broadcast %cst_5 : f32 to vector<16x128xf32>
    %17 = vector.broadcast %cst_6 : f32 to vector<16x128xf32>
    %18 = arith.select %15, %16, %17 : vector<16x128xi1>, vector<16x128xf32>
    %19 = arith.mulf %18, %3 : vector<16x128xf32>
    %cst_7 = arith.constant dense<0.000000e+00> : vector<16xf32>
    %20 = vector.multi_reduction <add>, %19, %cst_7 [1] : vector<16x128xf32> to vector<16xf32>
    %21 = vector.shape_cast %20 : vector<16xf32> to vector<16x1xf32>
    %22 = math.log %11 : vector<16x1xf32>
    %23 = arith.addf %6, %22 : vector<16x1xf32>
    %24 = arith.subf %23, %21 : vector<16x1xf32>
    %c2_i32 = arith.constant 2 : i32
    %25 = arith.muli %arg0, %c2_i32 : i32
    %26 = arith.addi %25, %arg1 : i32
    %c16_i32 = arith.constant 16 : i32
    %27 = arith.muli %26, %c16_i32 : i32
    %28 = tpu.iota {dimensions = array<i32: 0>} : vector<16x1xi32>
    %29 = vector.broadcast %27 : i32 to vector<16x1xi32>
    %30 = arith.addi %29, %28 : vector<16x1xi32>
    %c0_8 = arith.constant 0 : index
    %c0_9 = arith.constant 0 : index
    %31 = vector.load %arg5[%c0_8, %c0_9] : memref<16x1xf32, #tpu.memory_space<vmem>>, vector<16x1xf32>
    %c20_i32 = arith.constant 20 : i32
    %32 = vector.broadcast %c20_i32 : i32 to vector<16x1xi32>
    %33 = arith.cmpi slt, %30, %32 : vector<16x1xi32>
    %cst_10 = arith.constant 0.000000e+00 : f32
    %34 = vector.broadcast %cst_10 : f32 to vector<16x1xf32>
    %35 = arith.select %33, %24, %34 : vector<16x1xi1>, vector<16x1xf32>
    %36 = arith.addf %31, %35 : vector<16x1xf32>
    %c0_11 = arith.constant 0 : index
    %c0_12 = arith.constant 0 : index
    %37 = vector.load %arg5[%c0_11, %c0_12] : memref<16x1xf32, #tpu.memory_space<vmem>>, vector<16x1xf32>
    tpu.vector_store %arg5[%c0_11, %c0_12], %36 {strides = array<i32>} : memref<16x1xf32, #tpu.memory_space<vmem>>, vector<16x1xf32>,
    %c1_i32 = arith.constant 1 : i32
    %38 = arith.cmpi eq, %arg1, %c1_i32 : i32
    %39 = arith.extui %38 : i1 to i32
    %c0_i32_13 = arith.constant 0 : i32
    %40 = arith.cmpi ne, %39, %c0_i32_13 : i32
    scf.if %40 {
      %c0_14 = arith.constant 0 : index
      %c0_15 = arith.constant 0 : index
      %41 = vector.load %arg5[%c0_14, %c0_15] : memref<16x1xf32, #tpu.memory_space<vmem>>, vector<16x1xf32>
      %cst_16 = arith.constant dense<0.000000e+00> : vector<1xf32>
      %42 = vector.multi_reduction <add>, %41, %cst_16 [0] : vector<16x1xf32> to vector<1xf32>
      %43 = vector.shape_cast %42 : vector<1xf32> to vector<1x1xf32>
      %c0_17 = arith.constant 0 : index
      %c0_18 = arith.constant 0 : index
      %c0_19 = arith.constant 0 : index
      %44 = vector.load %arg4[%c0_17, %c0_18, %c0_19] : memref<1x1x1xf32, #tpu.memory_space<vmem>>, vector<1x1x1xf32>
      %45 = vector.shape_cast %44 : vector<1x1x1xf32> to vector<1x1xf32>
      %46 = vector.shape_cast %43 : vector<1x1xf32> to vector<1x1x1xf32>
      tpu.vector_store %arg4[%c0_17, %c0_18, %c0_19], %46 {strides = array<i32>} : memref<1x1x1xf32, #tpu.memory_space<vmem>>, vector<1x1x1xf32>,
    } else {
    }
    return
  }
  func.func @transform_0(%arg0: i32, %arg1: i32) -> (i32, i32) {
    %c2_i32 = arith.constant 2 : i32
    %0 = arith.muli %arg0, %c2_i32 : i32
    %1 = arith.addi %0, %arg1 : i32
    %c0_i32 = arith.constant 0 : i32
    %c0_i32_0 = arith.constant 0 : i32
    return %1, %c0_i32 : i32, i32
  }
  func.func @transform_1(%arg0: i32, %arg1: i32) -> (i32, i32) {
    %c2_i32 = arith.constant 2 : i32
    %0 = arith.muli %arg0, %c2_i32 : i32
    %1 = arith.addi %0, %arg1 : i32
    %c0_i32 = arith.constant 0 : i32
    %c0_i32_0 = arith.constant 0 : i32
    return %1, %c0_i32 : i32, i32
  }
  func.func @transform_2(%arg0: i32, %arg1: i32) -> (i32, i32, i32) {
    %c0_i32 = arith.constant 0 : i32
    %c0_i32_0 = arith.constant 0 : i32
    %c0_i32_1 = arith.constant 0 : i32
    return %arg0, %c0_i32, %c0_i32_0 : i32, i32, i32
  }
}

</mosaic_0001>

<llo_original>
// kernel: tpu_custom_call.1
$region0: #{tpu_custom_call.1}
  #allocation0 [shape = 'u32[]', space=smem, size = 0x4, offset = 0x4, fixed_abs, tag = 'smem constant byte address 0x4 - core index']
  #allocation1 [shape = 'u32[72,128]{1,0:T(1,128)}', space=vmem, size = 0x9000, scoped, tag = 'internal scratch']
  #allocation2 [shape = 'f32[16,1]{1,0:T(8,128)}', space=vmem, size = 0x2000, scoped, tag = 'scratch operand']
  %s0 = inlined_call_operand.vmem [shape: f32[20,128], index: 0, kind: input, shape index: {}]
  %s1 = inlined_call_operand.vmem [shape: s32[20,1], index: 1, kind: input, shape index: {}]
  %s2 = inlined_call_operand.hbm [shape: f32[1,1,1], index: 2, kind: output, shape index: {}]
  %s3 = sld [smem:[#allocation0]]
  $region49: #{tpu_custom_call.1} parent=0
    _
  %s5 = ssub.s32 1, %s3
  %s6 = scalar_select 0, %s5, %s3
  $region1: #{tpu_custom_call.1} parent=0
    #allocation3 [shape = 'u8[512]{0}', space=vmem, size = 0x400, scoped, tag = 'output window, operand 0, single buffered']
    #allocation4 [shape = 's32[2]{0}', space=sflag, size = 0x8, scoped, tag = 'scoped memory for tpu_custom_call.1']
    %7 = vsyncpa [#allocation4], 0
    loop: start=0, step=1, limit=4
    $region2: #{tpu_custom_call.1} parent=1 // loop_pre_header
      _
    $region3: #{tpu_custom_call.1} parent=1 // loop_header
      %s9 = sphi 0, %s13
      %p10 = scmp.ge.s32.totalorder %s9, 4
      %s16 = sphi 0, %s28
      %s17 = sphi 0, %s24
      %s18 = sphi 0, %s16
      %s19 = sphi 0, %s17
      %s20 = sphi 0, %s18
      %s21 = sphi 0, %s19
      %s35 = sphi 0, %s37
      %s38 = sphi 0, %s35
      %s39 = sphi 0, %s38
      %s55 = sphi 0, %s39
      %s65 = sphi 0, %s67
      %s68 = sphi 0, %s65
      %s69 = sphi 0, %s68
      %s85 = sphi 0, %s69
      %s91 = sphi 0, %s93
      %s94 = sphi 0, %s91
      %s95 = sphi 0, %s94
      %s111 = sphi 0, %s95
    $region4: #{tpu_custom_call.1} parent=1 // loop_header_branch
      %12 = sbr.rel (%p10) target = $region8
    $region5: #{tpu_custom_call.1} parent=1 // loop_body
      %s14 = ssub.s32 %s9, 1
      %s15 = ssub.s32 %s9, 2
      %s22 = sadd.s32 1, %s17
      %p23 = scmp.ge.s32.totalorder %s22, 2
      %s24 = scalar_select %p23, 0, %s22
      %s25 = sadd.s32 1, %s16
      %s26 = scalar_select %p23, %s25, %s16
      %p27 = scmp.ge.s32.totalorder %s26, 1
      %s28 = scalar_select %p27, 0, %s26
      %s29 = smul.u32 %s16, 2
      %s30 = sadd.s32 %s29, %s17
      %s31 = smul.u32 %s28, 2
      %s32 = sadd.s32 %s31, %s24
      %s33 = ssub.s32 %s30, %s32
      %p34 = scmp.eq.s32.totalorder %s33, 0
      %s36 = sadd.s32 %s35, 1
      %s37 = scalar_select %p34, %s35, %s36
      %p40 = pneg %p34
      %p41 = scmp.eq.s32.totalorder %s9, 1
      %p42 = por %p40, %p41
      %p43 = scmp.ne.s32.totalorder %s35, %s38
      %p44 = scmp.eq.s32.totalorder %s9, 0
      %p45 = por %p43, %p44
      %p46 = scmp.ne.s32.totalorder %s35, %s38
      %p47 = scmp.eq.s32.totalorder %s14, 1
      %p48 = por %p46, %p47
      %p49 = scmp.ne.s32.totalorder %s38, %s39
      %p50 = scmp.eq.s32.totalorder %s14, 0
      %p51 = por %p49, %p50
      %p52 = scmp.ne.s32.totalorder %s38, %s39
      %p53 = scmp.eq.s32.totalorder %s15, 1
      %p54 = por %p52, %p53
      %p56 = scmp.ne.s32.totalorder %s39, %s55
      %p57 = scmp.eq.s32.totalorder %s15, 0
      %p58 = por %p56, %p57
      %s59 = smul.u32 %s16, 2
      %s60 = sadd.s32 %s59, %s17
      %s61 = smul.u32 %s28, 2
      %s62 = sadd.s32 %s61, %s24
      %s63 = ssub.s32 %s60, %s62
      %p64 = scmp.eq.s32.totalorder %s63, 0
      %s66 = sadd.s32 %s65, 1
      %s67 = scalar_select %p64, %s65, %s66
      %p70 = pneg %p64
      %p71 = scmp.eq.s32.totalorder %s9, 1
      %p72 = por %p70, %p71
      %p73 = scmp.ne.s32.totalorder %s65, %s68
      %p74 = scmp.eq.s32.totalorder %s9, 0
      %p75 = por %p73, %p74
      %p76 = scmp.ne.s32.totalorder %s65, %s68
      %p77 = scmp.eq.s32.totalorder %s14, 1
      %p78 = por %p76, %p77
      %p79 = scmp.ne.s32.totalorder %s68, %s69
      %p80 = scmp.eq.s32.totalorder %s14, 0
      %p81 = por %p79, %p80
      %p82 = scmp.ne.s32.totalorder %s68, %s69
      %p83 = scmp.eq.s32.totalorder %s15, 1
      %p84 = por %p82, %p83
      %p86 = scmp.ne.s32.totalorder %s69, %s85
      %p87 = scmp.eq.s32.totalorder %s15, 0
      %p88 = por %p86, %p87
      %s89 = ssub.s32 %s16, %s28
      %p90 = scmp.eq.s32.totalorder %s89, 0
      %s92 = sadd.s32 %s91, 1
      %s93 = scalar_select %p90, %s91, %s92
      %p96 = pneg %p90
      %p97 = scmp.eq.s32.totalorder %s9, 1
      %p98 = por %p96, %p97
      %p99 = scmp.ne.s32.totalorder %s91, %s94
      %p100 = scmp.eq.s32.totalorder %s9, 0
      %p101 = por %p99, %p100
      %p102 = scmp.ne.s32.totalorder %s91, %s94
      %p103 = scmp.eq.s32.totalorder %s14, 1
      %p104 = por %p102, %p103
      %p105 = scmp.ne.s32.totalorder %s94, %s95
      %p106 = scmp.eq.s32.totalorder %s14, 0
      %p107 = por %p105, %p106
      %p108 = scmp.ne.s32.totalorder %s94, %s95
      %p109 = scmp.eq.s32.totalorder %s15, 1
      %p110 = por %p108, %p109
      %p112 = scmp.ne.s32.totalorder %s95, %s111
      %p113 = scmp.eq.s32.totalorder %s15, 0
      %p114 = por %p112, %p113
      %p115 = scmp.le.s32.totalorder 1, %s9
      %p116 = scmp.lt.s32.totalorder %s9, 3
      %p117 = pnand %p115, %p116
      %p118 = pneg %p117
      // Predicated region
      $region9: #{tpu_custom_call.1} parent=5 // pred_check
        _
      $region10: #{tpu_custom_call.1} parent=5 // pred_check_branch
        %120 = sbr.rel (%p117) target = $region12
      $region11: #{tpu_custom_call.1} parent=5 // pred_region
        %s121 = ssub.s32 %s9, 1
      $region12: #{tpu_custom_call.1} parent=5 // pred_fallthru
        _
      %p122 = scmp.lt.s32.totalorder %s9, 2
      // Predicated region
      $region13: #{tpu_custom_call.1} parent=5 // pred_check
        %p123 = pneg %p122
      $region14: #{tpu_custom_call.1} parent=5 // pred_check_branch
        %125 = sbr.rel (%p123) target = $region16
      $region15: #{tpu_custom_call.1} parent=5 // pred_region
        // Predicated region
        $region17: #{tpu_custom_call.1} parent=15 // pred_check
          %p126 = pneg %p45
        $region18: #{tpu_custom_call.1} parent=15 // pred_check_branch
          %128 = sbr.rel (%p126) target = $region20
        $region19: #{tpu_custom_call.1} parent=15 // pred_region
          %s129 = smul.u32 %s16, 2
          %s130 = sadd.s32 %s129, %s17
          %s131 = smul.u32 2, %s130
          %s132 = ssub.s32 3, %s131
          %p133 = scmp.lt.s32.totalorder %s132, 2
          %s134 = scalar_select %p133, %s132, 2
          %s135 = smul.u32 8, %s134
          %p136 = scmp.lt.s32.totalorder %s131, 2
          %s137 = scalar_select %p136, %s131, 2
          %s138 = smul.addr %s137, 8
          %s139 = scalar_lea.vmem %s0, %s138
          %s140 = smul.u32 %s16, 2
          %s141 = sadd.s32 %s140, %s17
          %s142 = smul.u32 2, %s141
          %s143 = ssub.s32 3, %s142
          %p144 = scmp.lt.s32.totalorder %s143, 2
          %s145 = scalar_select %p144, %s143, 2
          %s146 = smul.u32 8, %s145
        $region20: #{tpu_custom_call.1} parent=15 // pred_fallthru
          _
        // Predicated region
        $region21: #{tpu_custom_call.1} parent=15 // pred_check
          %p147 = pneg %p75
        $region22: #{tpu_custom_call.1} parent=15 // pred_check_branch
          %149 = sbr.rel (%p147) target = $region24
        $region23: #{tpu_custom_call.1} parent=15 // pred_region
          %s150 = smul.u32 %s16, 2
          %s151 = sadd.s32 %s150, %s17
          %s152 = smul.u32 2, %s151
          %s153 = ssub.s32 3, %s152
          %p154 = scmp.lt.s32.totalorder %s153, 2
          %s155 = scalar_select %p154, %s153, 2
          %s156 = smul.u32 8, %s155
          %p157 = scmp.lt.s32.totalorder %s152, 2
          %s158 = scalar_select %p157, %s152, 2
          %s159 = smul.addr %s158, 8
          %s160 = scalar_lea.vmem %s1, %s159
          %s161 = smul.u32 %s16, 2
          %s162 = sadd.s32 %s161, %s17
          %s163 = smul.u32 2, %s162
          %s164 = ssub.s32 3, %s163
          %p165 = scmp.lt.s32.totalorder %s164, 2
          %s166 = scalar_select %p165, %s164, 2
          %s167 = smul.u32 8, %s166
        $region24: #{tpu_custom_call.1} parent=15 // pred_fallthru
          _
      $region16: #{tpu_custom_call.1} parent=5 // pred_fallthru
        _
      %p168 = scmp.le.s32.totalorder 1, %s9
      %p169 = scmp.lt.s32.totalorder %s9, 3
      %p170 = pnand %p168, %p169
      %p171 = pneg %p170
      // Predicated region
      $region25: #{tpu_custom_call.1} parent=5 // pred_check
        _
      $region26: #{tpu_custom_call.1} parent=5 // pred_check_branch
        %173 = sbr.rel (%p170) target = $region28
      $region27: #{tpu_custom_call.1} parent=5 // pred_region
        %s174 = ssub.s32 %s9, 1
        %s175 = smul.u32 %s18, 2
        %s176 = sadd.s32 %s175, %s19
        %s177 = smul.u32 2, %s176
        %s178 = ssub.s32 3, %s177
        %p179 = scmp.lt.s32.totalorder %s178, 2
        %s180 = scalar_select %p179, %s178, 2
        %s181 = smul.u32 8, %s180
        %p182 = scmp.lt.s32.totalorder %s177, 2
        %s183 = scalar_select %p182, %s177, 2
        %s184 = smul.addr %s183, 8
        %s185 = scalar_lea.vmem %s0, %s184
        %p186 = pneg %p51
        %p187 = pneg %p48
        %s188 = smul.u32 %s18, 2
        %s189 = sadd.s32 %s188, %s19
        %s190 = smul.u32 2, %s189
        %s191 = ssub.s32 3, %s190
        %p192 = scmp.lt.s32.totalorder %s191, 2
        %s193 = scalar_select %p192, %s191, 2
        %s194 = smul.u32 8, %s193
        %p195 = scmp.lt.s32.totalorder %s190, 2
        %s196 = scalar_select %p195, %s190, 2
        %s197 = smul.addr %s196, 8
        %s198 = scalar_lea.vmem %s1, %s197
        %p199 = pneg %p81
        %p200 = pneg %p78
        %p201 = pneg %p107
        %p202 = pneg %p104
        %s203 = smul.u32 %s18, 2
        %s204 = sadd.s32 %s203, %s19
        %s205 = smul.u32 2, %s204
        %s206 = ssub.s32 3, %s205
        %p207 = scmp.lt.s32.totalorder %s206, 2
        %s208 = scalar_select %p207, %s206, 2
        %s209 = smul.u32 8, %s208
        %p210 = scmp.lt.s32.totalorder %s205, 2
        %s211 = scalar_select %p210, %s205, 2
        %s212 = smul.addr %s211, 8
        %s213 = scalar_lea.vmem %s0, %s212
        %s214 = smul.u32 %s18, 2
        %s215 = sadd.s32 %s214, %s19
        %s216 = smul.u32 2, %s215
        %s217 = ssub.s32 3, %s216
        %p218 = scmp.lt.s32.totalorder %s217, 2
        %s219 = scalar_select %p218, %s217, 2
        %s220 = smul.u32 8, %s219
        %s221 = smul.u32 %s18, 2
        %s222 = sadd.s32 %s221, %s19
        %s223 = smul.u32 2, %s222
        %s224 = ssub.s32 3, %s223
        %p225 = scmp.lt.s32.totalorder %s224, 2
        %s226 = scalar_select %p225, %s224, 2
        %s227 = smul.u32 8, %s226
        %p228 = scmp.lt.s32.totalorder %s223, 2
        %s229 = scalar_select %p228, %s223, 2
        %s230 = smul.addr %s229, 8
        %s231 = scalar_lea.vmem %s1, %s230
        %s232 = smul.u32 %s18, 2
        %s233 = sadd.s32 %s232, %s19
        %s234 = smul.u32 2, %s233
        %s235 = ssub.s32 3, %s234
        %p236 = scmp.lt.s32.totalorder %s235, 2
        %s237 = scalar_select %p236, %s235, 2
        %s238 = smul.u32 8, %s237
        %p239 = scmp.eq.s32.totalorder %s19, 0
        // Predicated region
        $region29: #{tpu_custom_call.1} parent=27 // pred_check
          %p240 = pneg %p239
        $region30: #{tpu_custom_call.1} parent=27 // pred_check_branch
          %242 = sbr.rel (%p240) target = $region32
        $region31: #{tpu_custom_call.1} parent=27 // pred_region
          %vm243 = vcmask 7168
          %244 = vst.msk [vmem:[#allocation2] sm:$0xff] %vm243, 0.0
          %245 = vst.msk [vmem:[#allocation2 + $0x8] sm:$0xff] %vm243, 0.0
        $region32: #{tpu_custom_call.1} parent=27 // pred_fallthru
          _
        %v246 = vld [vmem:[%s213] sm:$0xff]
        %v247 = vld [vmem:[%s213 + $0x8] sm:$0xff]
        %v248 = vld [vmem:[%s231] sm:$0xff]
        %v249 = vld [vmem:[%s231 + $0x8] sm:$0xff]
        %250 = vmax.xlane.f32.xlu0 %v246
        %v251 = vpop.xlane.xlu0 %250
        %252 = vmax.xlane.f32.xlu0 %v247
        %v253 = vpop.xlane.xlu0 %252
        %v254 = vsub.f32 %v246, %v251
        %v255 = vsub.f32 %v247, %v253
        %v256 = vmul.f32 %v254, 1.442695
        %v257 = vpow.pop %v256
        %v258 = vmul.f32 %v255, 1.442695
        %v259 = vpow.pop %v258
        %260 = vadd.xlane.f32.xlu0 %v257
        %v261 = vpop.xlane.xlu0 %260
        %262 = vadd.xlane.f32.xlu0 %v259
        %v263 = vpop.xlane.xlu0 %262
        %v264 = vlaneseq
        %v265 = vand.u32 %v264, 127
        %266 = vset.pattern.permute.xlu0 0
        %267 = vperm.xlu0 %266, %v248
        %v268 = vpop.permute.xlu0 %267
        %269 = vset.pattern.permute.xlu0 0
        %270 = vperm.xlu0 %269, %v249
        %v271 = vpop.permute.xlu0 %270
        %vm272 = vcmp.eq.s32.totalorder %v265, %v268
        %vm273 = vcmp.eq.s32.totalorder %v265, %v271
        %v274 = vsel %vm272, 0.9007813, 0.00078125
        %v275 = vsel %vm273, 0.9007813, 0.00078125
        %v276 = vmul.f32 %v274, %v246
        %v277 = vmul.f32 %v275, %v247
        %278 = vadd.xlane.f32.xlu0 %v276
        %v279 = vpop.xlane.xlu0 %278
        %280 = vadd.xlane.f32.xlu0 %v277
        %v281 = vpop.xlane.xlu0 %280
        %v282 = vlog2.pop %v261
        %v283 = vmul.f32 %v282, 0.6931472
        %v284 = vlog2.pop %v263
        %v285 = vmul.f32 %v284, 0.6931472
        %v286 = vadd.f32 %v251, %v283
        %v287 = vadd.f32 %v253, %v285
        %v288 = vsub.f32 %v286, %v279
        %v289 = vsub.f32 %v287, %v281
        %s290 = smul.u32 %s18, 2
        %s291 = sadd.s32 %s290, %s19
        %s292 = smul.u32 %s291, 16
        %v293 = vlaneseq
        %v294 = vshrl.u32 %v293, 7
        %v295 = vadd.s32 %v294, 8
        %v296 = vstv %s292
        %v297 = vadd.s32 %v296, %v294
        %v298 = vadd.s32 %v296, %v295
        %v299 = vld [vmem:[#allocation2] sm:$0xff]
        %v300 = vld [vmem:[#allocation2 + $0x8] sm:$0xff]
        %vm301 = vcmp.lt.s32.totalorder %v297, 20
        %vm302 = vcmp.lt.s32.totalorder %v298, 20
        %v303 = vsel %vm301, %v288, 0.0
        %v304 = vsel %vm302, %v289, 0.0
        %v305 = vadd.f32 %v299, %v303
        %v306 = vadd.f32 %v300, %v304
        %vm307 = vcmask 7168
        %308 = vst.msk [vmem:[#allocation2] sm:$0xff] %vm307, %v305
        %309 = vst.msk [vmem:[#allocation2 + $0x8] sm:$0xff] %vm307, %v306
        %p310 = scmp.eq.s32.totalorder %s19, 1
        // Predicated region
        $region33: #{tpu_custom_call.1} parent=27 // pred_check
          %p311 = pneg %p310
        $region34: #{tpu_custom_call.1} parent=27 // pred_check_branch
          %313 = sbr.rel (%p311) target = $region36
        $region35: #{tpu_custom_call.1} parent=27 // pred_region
          %v314 = vld [vmem:[#allocation2] sm:$0xff]
          %v315 = vld [vmem:[#allocation2 + $0x8] sm:$0xff]
          %v316 = vsel %vm307, %v314, 0.0
          %v317 = vsel %vm307, %v315, 0.0
          %v318 = vadd.f32 %v316, %v317
          %v319 = vrot.slane %v318, 4
          %v320 = vadd.f32 %v318, %v319
          %v321 = vrot.slane %v320, 2
          %v322 = vadd.f32 %v320, %v321
          %v323 = vrot.slane %v322, 1
          %v324 = vadd.f32 %v322, %v323
          %vm325 = vcmask 0
          %326 = vst.msk [vmem:[#allocation3] sm:$0x1] %vm325, %v324
        $region36: #{tpu_custom_call.1} parent=27 // pred_fallthru
          _
        // Predicated region
        $region37: #{tpu_custom_call.1} parent=27 // pred_check
          %p327 = pneg %p104
        $region38: #{tpu_custom_call.1} parent=27 // pred_check_branch
          %329 = sbr.rel (%p327) target = $region40
        $region39: #{tpu_custom_call.1} parent=27 // pred_region
          %331 = vsyncadd [#allocation4], 0
          %s332 = scalar_lea.hbm %s2, %s18
          %s334 = sshll.u32 [#allocation3], 4
          %s335 = int_to_ptr.vmem [resolvable:$true] %s334
          %s336 = sshll.u32 %s332, 4
          %s337 = int_to_ptr.hbm [resolvable:$true] %s336
          %339 = dma.vmem_to_hbm [thread:$0]  %s335, 16, %s337, [#allocation4]
        $region40: #{tpu_custom_call.1} parent=27 // pred_fallthru
          _
        // Predicated region
        $region41: #{tpu_custom_call.1} parent=27 // pred_check
          %p340 = pneg %p104
        $region42: #{tpu_custom_call.1} parent=27 // pred_check_branch
          %342 = sbr.rel (%p340) target = $region44
        $region43: #{tpu_custom_call.1} parent=27 // pred_region
          %344 = dma.done [#allocation4], 16
        $region44: #{tpu_custom_call.1} parent=27 // pred_fallthru
          _
      $region28: #{tpu_custom_call.1} parent=5 // pred_fallthru
        _
      %p345 = scmp.le.s32.totalorder 2, %s9
      // Predicated region
      $region45: #{tpu_custom_call.1} parent=5 // pred_check
        %p346 = pneg %p345
      $region46: #{tpu_custom_call.1} parent=5 // pred_check_branch
        %348 = sbr.rel (%p346) target = $region48
      $region47: #{tpu_custom_call.1} parent=5 // pred_region
        %s349 = ssub.s32 %s9, 2
      $region48: #{tpu_custom_call.1} parent=5 // pred_fallthru
        _
    $region6: #{tpu_custom_call.1} parent=1 // loop_footer
      %s13 = sadd.s32 1, %s9
    $region7: #{tpu_custom_call.1} parent=1 // loop_footer_branch
      %8 = sbr.rel target = $region3
    $region8: #{tpu_custom_call.1} parent=1 // loop_exit
      _
    %350 = vsyncpa [#allocation4], 1
    %s351 = scalar_lea.sflag [#allocation4], 1
    %352 = vsyncpa %s351, 1

</llo_original>
